<compile_context>
chip_gen: v6e
topology: v6e:2x2x1
jax: 0.10.0
libtpu: 0.0.40
codegen_flags: <defaults>
</compile_context>

<pallas_src>
import jax
import jax.numpy as jnp
from jax.experimental import pallas as pl
from jax.experimental.pallas import tpu as pltpu

_LANE = 128
_SUBLANE = 8


def _round_up(x, m):
    return ((x + m - 1) // m) * m


def _round_down(x, m):
    return max(m, (x // m) * m)


def _vmem_knobs():
    """Generation-aware VMEM sizing (v7x: 64 MiB/TC physical; v5e/v6e: 128 MiB)."""
    try:
        cap = int(pltpu.get_tpu_info().vmem_capacity_bytes)
    except Exception:
        cap = 64 * 1024 * 1024  # conservative (v7x-sized) fallback
    limit = min((cap * 3) // 4, 100 * 1024 * 1024)   # ~48 MiB on v7x, ~96 MiB on v5e/v6e
    budget = max(limit - 8 * 1024 * 1024, 8 * 1024 * 1024)
    return limit, budget


# ----------------------------- Pallas kernels --------------------------------
def _proj_kernel(x_ref, w1_ref, b1_ref, w2_ref, b2_ref, ws_ref, o_ref):
    # x_ref: (TM, Cin) tile of pixels; weights (BN-scale folded in) are small matrices
    # resident in VMEM. All matmuls accumulate in f32 on the MXU.
    x = x_ref[...]
    sc = jnp.dot(x, ws_ref[...], preferred_element_type=jnp.float32)       # shortcut
    h = jnp.dot(x, w1_ref[...], preferred_element_type=jnp.float32)        # conv1 + BN
    h = jnp.maximum(h + b1_ref[...], 0.0)                                  # + ReLU
    h = jnp.dot(h.astype(w2_ref.dtype), w2_ref[...],
                preferred_element_type=jnp.float32)                        # conv2 + BN
    h = jnp.maximum(h + b2_ref[...], 0.0)                                  # + ReLU
    res = jnp.maximum(h + sc, 0.0)                                         # residual+ReLU
    # store only the useful lanes (no padded output columns in HBM, no post-slice)
    o_ref[...] = res[:, : o_ref.shape[1]].astype(o_ref.dtype)


def _identity_kernel(x_ref, w1_ref, b1_ref, w2_ref, b2_ref, o_ref):
    # Identity shortcut: no shortcut matmul; residual add done on the first Cin lanes
    # entirely in VMEM (x is never channel-padded in HBM).
    x = x_ref[...]
    h = jnp.dot(x, w1_ref[...], preferred_element_type=jnp.float32)
    h = jnp.maximum(h + b1_ref[...], 0.0)
    h = jnp.dot(h.astype(w2_ref.dtype), w2_ref[...],
                preferred_element_type=jnp.float32)
    h = jnp.maximum(h + b2_ref[...], 0.0)
    res = h[:, : o_ref.shape[1]] + x.astype(jnp.float32)
    o_ref[...] = jnp.maximum(res, 0.0).astype(o_ref.dtype)


# ------------------------------- core wrapper ---------------------------------
def bottleneck_matmul(x2, params, *, out_planes, tile_m=2048):
    """x2: (M, Cin) pixels-as-rows. Returns (M, out_planes) with x2's dtype."""
    M, Cin = x2.shape
    w1, b1 = params["w1"], params["b1"]          # (Cin, Cout_p), (1, Cout_p)
    w2, b2 = params["w2"], params["b2"]          # (Cout_p, Cout_p), (1, Cout_p)
    ws = params["ws"]                            # (Cin, Cout_p) or None (identity)
    Cout_p = w1.shape[1]
    identity = ws is None
    assert w1.shape[0] == Cin, (w1.shape, Cin)
    if identity:
        assert Cin == out_planes, "identity shortcut needs in_planes == out_planes"
    out_dtype = x2.dtype                         # output dtype follows activations

    weights = (w1, b1, w2, b2) + (() if identity else (ws,))
    weight_bytes = sum(int(a.size) * a.dtype.itemsize for a in weights)
    vmem_limit, vmem_budget = _vmem_knobs()
    x_itemsize = x2.dtype.itemsize
    o_itemsize = jnp.dtype(out_dtype).itemsize

    def vmem_bytes(t):
        # double-buffered x tile + double-buffered output tile + f32 intermediates
        # + weights (conservatively counted double-buffered; see header TODO).
        return (2 * t * Cin * x_itemsize
                + 2 * t * out_planes * o_itemsize
                + 3 * t * Cout_p * 4
                + 2 * weight_bytes)

    # tile_m: multiple of 8 (or == M when tiny), clamped to the VMEM budget, and split
    # so there are >=2 grid steps (keeps both v7x TensorCores busy on small inputs).
    if M <= _SUBLANE:
        tm = M
    else:
        tm = _round_down(min(tile_m, M), _SUBLANE)
        while tm > _SUBLANE and vmem_bytes(tm) > vmem_budget:
            tm = _round_down(tm // 2, _SUBLANE)
        if pl.cdiv(M, tm) < 2 and M >= 2 * _SUBLANE:
            tm = _round_down(pl.cdiv(M, 2), _SUBLANE)

    grid = (pl.cdiv(M, tm),)   # partial last block handled by Pallas (no row padding)
    row = lambda i: (i, 0)
    rep = lambda i: (0, 0)     # weights / shifts replicated (same block every step)

    x_spec = pl.BlockSpec((tm, Cin), row)
    w1_spec = pl.BlockSpec(w1.shape, rep)
    w2_spec = pl.BlockSpec(w2.shape, rep)
    b1_spec = pl.BlockSpec(b1.shape, rep)
    b2_spec = pl.BlockSpec(b2.shape, rep)
    o_spec = pl.BlockSpec((tm, out_planes), row)
    cparams = pltpu.CompilerParams(
        dimension_semantics=("parallel",),       # shard pixel axis across cores
        vmem_limit_bytes=vmem_limit,
    )
    out_shape = jax.ShapeDtypeStruct((M, out_planes), out_dtype)

    if identity:
        return pl.pallas_call(
            _identity_kernel,
            out_shape=out_shape,
            grid=grid,
            in_specs=[x_spec, w1_spec, b1_spec, w2_spec, b2_spec],
            out_specs=o_spec,
            compiler_params=cparams,
        )(x2, w1, b1, w2, b2)

    ws_spec = pl.BlockSpec(ws.shape, rep)
    return pl.pallas_call(
        _proj_kernel,
        out_shape=out_shape,
        grid=grid,
        in_specs=[x_spec, w1_spec, b1_spec, w2_spec, b2_spec, ws_spec],
        out_specs=o_spec,
        compiler_params=cparams,
    )(x2, w1, b1, w2, b2, ws)


def bottleneck_forward_nhwc(x_nhwc, params, *, out_planes, tile_m=2048):
    """Preferred entry point: NHWC activations, no transposes (reshape only)."""
    N, H, W, C = x_nhwc.shape
    out = bottleneck_matmul(x_nhwc.reshape(N * H * W, C), params,
                            out_planes=out_planes, tile_m=tile_m)
    return out.reshape(N, H, W, out_planes)


def bottleneck_forward(x_nchw, params, *, out_planes, tile_m=2048):
    """NCHW compatibility wrapper (keep the whole network NHWC to avoid this)."""
    x_nhwc = jnp.transpose(x_nchw, (0, 2, 3, 1))
    out = bottleneck_forward_nhwc(x_nhwc, params, out_planes=out_planes, tile_m=tile_m)
    return jnp.transpose(out, (0, 3, 1, 2))


# --------------------------- parameter construction ---------------------------
def prepare_params(w1, s1, b1, w2, s2, b2, ws, *, dtype=jnp.float32):
    """Fold BN scales into the conv weights and zero-pad only weight *columns* to a
    lane multiple (activations are never padded in HBM).

    w1: (Cin, Cout), w2: (Cout, Cout), ws: (Cin, Cout) or None (identity shortcut).
    s*/b*: per-channel BN-eval scale/shift of length Cout.
    """
    in_planes, out_planes = w1.shape
    cout_p = _round_up(out_planes, _LANE)

    def pad_cols(w):
        return jnp.pad(w, ((0, 0), (0, cout_p - w.shape[1])))

    w1f = pad_cols(w1 * s1[None, :]).astype(dtype)
    w2f = jnp.pad(w2 * s2[None, :],
                  ((0, cout_p - out_planes), (0, cout_p - out_planes))).astype(dtype)
    b1p = jnp.pad(b1, (0, cout_p - out_planes)).reshape(1, cout_p).astype(jnp.float32)
    b2p = jnp.pad(b2, (0, cout_p - out_planes)).reshape(1, cout_p).astype(jnp.float32)
    wsp = None if ws is None else pad_cols(ws).astype(dtype)
    return dict(w1=w1f, b1=b1p, w2=w2f, b2=b2p, ws=wsp)


def make_params(key, in_planes, out_planes, *, stride=1, expansion=4,
                use_projection_shortcut=None, dtype=jnp.float32, eps=1e-5):
    """Random BatchNorm-eval parameters, then folded/padded via prepare_params."""
    ks = jax.random.split(key, 11)

    def bn(kg, kb, km, kv, c):
        gamma = 1.0 + 0.1 * jax.random.normal(kg, (c,), jnp.float32)
        beta = 0.1 * jax.random.normal(kb, (c,), jnp.float32)
        mean = 0.1 * jax.random.normal(km, (c,), jnp.float32)
        var = jnp.abs(jax.random.normal(kv, (c,), jnp.float32)) + 0.5
        scale = gamma / jnp.sqrt(var + eps)
        return scale, beta - mean * scale

    # conv weights stored already transposed: (Cin, Cout) so the kernel does x @ W^T
    w1 = 0.2 * jax.random.normal(ks[0], (in_planes, out_planes), jnp.float32)
    w2 = 0.2 * jax.random.normal(ks[1], (out_planes, out_planes), jnp.float32)
    s1, b1 = bn(ks[2], ks[3], ks[4], ks[5], out_planes)
    s2, b2 = bn(ks[6], ks[7], ks[8], ks[9], out_planes)

    if use_projection_shortcut is None:
        # PyTorch rule: projection iff stride != 1 or in_planes != expansion*out_planes.
        use_projection_shortcut = (stride != 1) or (in_planes != expansion * out_planes)
    # TODO(synk): stride>1 spatial subsampling unsupported (shape-inconsistent in the
    # original module as well); shortcut projects in_planes -> out_planes (see header).
    if use_projection_shortcut:
        ws = 0.2 * jax.random.normal(ks[10], (in_planes, out_planes), jnp.float32)
    else:
        assert in_planes == out_planes, "identity shortcut needs in_planes == out_planes"
        ws = None

    return prepare_params(w1, s1, b1, w2, s2, b2, ws, dtype=dtype)


# ------------------------------ pure-JAX reference ----------------------------
def bottleneck_ref(x_nchw, params, *, out_planes):
    N, C, H, W = x_nchw.shape
    x2 = jnp.transpose(x_nchw, (0, 2, 3, 1)).reshape(N * H * W, C)
    xf = x2.astype(jnp.float32)
    w1 = params["w1"].astype(jnp.float32)
    w2 = params["w2"].astype(jnp.float32)
    h = jnp.maximum(xf @ w1 + params["b1"], 0.0)
    h = jnp.maximum(h.astype(params["w2"].dtype).astype(jnp.float32) @ w2
                    + params["b2"], 0.0)
    if params["ws"] is None:
        res = jnp.maximum(h[:, :out_planes] + xf, 0.0)
    else:
        sc = xf @ params["ws"].astype(jnp.float32)
        res = jnp.maximum(h + sc, 0.0)[:, :out_planes]
    out = res.astype(x_nchw.dtype).reshape(N, H, W, out_planes)
    return jnp.transpose(out, (0, 3, 1, 2))


if __name__ == "__main__":
    key = jax.random.PRNGKey(0)
    k_x, k_p, k_p2 = jax.random.split(key, 3)

    # small shapes consistent with the module: batch=2, channels=4, spatial=16
    N, in_planes, out_planes, H, W = 2, 4, 4, 16, 16
    x = jax.random.normal(k_x, (N, in_planes, H, W), jnp.float32)

    run = jax.jit(lambda xx, pp: bottleneck_forward(xx, pp, out_planes=out_planes))

    # ---- projection-shortcut path, f32 ----
    params = make_params(k_p, in_planes, out_planes, stride=1)
    out = jax.block_until_ready(run(x, params))
    ref = bottleneck_ref(x, params, out_planes=out_planes)
    assert out.shape == (N, out_planes, H, W), out.shape
    assert out.dtype == x.dtype, out.dtype
    assert jnp.allclose(out, ref, atol=1e-4, rtol=1e-4), \
        float(jnp.max(jnp.abs(out - ref)))

    # ---- projection-shortcut path, bf16 activations/weights/output (f32 accum) ----
    params_bf16 = make_params(k_p, in_planes, out_planes, stride=1, dtype=jnp.bfloat16)
    x_bf16 = x.astype(jnp.bfloat16)
    out_bf16 = jax.block_until_ready(run(x_bf16, params_bf16))
    ref_bf16 = bottleneck_ref(x_bf16, params_bf16, out_planes=out_planes)
    assert out_bf16.dtype == jnp.bfloat16, out_bf16.dtype
    assert jnp.allclose(out_bf16.astype(jnp.float32), ref_bf16.astype(jnp.float32),
                        atol=3e-2, rtol=3e-2), \
        float(jnp.max(jnp.abs(out_bf16.astype(jnp.float32)
                              - ref_bf16.astype(jnp.float32))))

    # ---- identity-shortcut path (simplified: in_planes == out_planes), f32 ----
    params_id = make_params(k_p2, in_planes, out_planes, use_projection_shortcut=False)
    out_id = jax.block_until_ready(run(x, params_id))
    ref_id = bottleneck_ref(x, params_id, out_planes=out_planes)
    assert jnp.allclose(out_id, ref_id, atol=1e-4, rtol=1e-4), \
        float(jnp.max(jnp.abs(out_id - ref_id)))

    print("KERNEL_OK")
</pallas_src>

<mosaic_0001>
module attributes {stable_mosaic.version = 11 : i64} {
  func.func @_proj_kernel(%arg0: i32, %arg1: memref<256x4xf32, #tpu.memory_space<vmem>>, %arg2: memref<4x128xf32, #tpu.memory_space<vmem>>, %arg3: memref<1x128xf32, #tpu.memory_space<vmem>>, %arg4: memref<128x128xf32, #tpu.memory_space<vmem>>, %arg5: memref<1x128xf32, #tpu.memory_space<vmem>>, %arg6: memref<4x128xf32, #tpu.memory_space<vmem>>, %arg7: memref<256x4xf32, #tpu.memory_space<vmem>>) attributes {dimension_semantics = [#tpu.dimension_semantics<parallel>], iteration_bounds = array<i64: 2>, scalar_prefetch = 0 : i64, scratch_operands = 0 : i64, tpu.core_type = #tpu.core_type<tc>, window_params = [{transform_indices = @transform_0, window_bounds = array<i64: 256, 4>}, {pipeline_mode = #tpu.pipeline_mode<synchronous>, transform_indices = @transform_1, window_bounds = array<i64: 4, 128>}, {pipeline_mode = #tpu.pipeline_mode<synchronous>, transform_indices = @transform_2, window_bounds = array<i64: 1, 128>}, {pipeline_mode = #tpu.pipeline_mode<synchronous>, transform_indices = @transform_3, window_bounds = array<i64: 128, 128>}, {pipeline_mode = #tpu.pipeline_mode<synchronous>, transform_indices = @transform_4, window_bounds = array<i64: 1, 128>}, {pipeline_mode = #tpu.pipeline_mode<synchronous>, transform_indices = @transform_5, window_bounds = array<i64: 4, 128>}, {transform_indices = @transform_6, window_bounds = array<i64: 256, 4>}]} {
    %c0 = arith.constant 0 : index
    %c0_0 = arith.constant 0 : index
    %0 = vector.load %arg1[%c0, %c0_0] : memref<256x4xf32, #tpu.memory_space<vmem>>, vector<256x4xf32>
    %c0_1 = arith.constant 0 : index
    %c0_2 = arith.constant 0 : index
    %1 = vector.load %arg6[%c0_1, %c0_2] : memref<4x128xf32, #tpu.memory_space<vmem>>, vector<4x128xf32>
    %cst = arith.constant dense<0.000000e+00> : vector<256x128xf32>
    %2 = tpu.matmul %0, %1, %cst {dimension_numbers = #tpu.dot_dimension_numbers<[1], [0], [0], [1], [0, 0, 1, 1], [], []>} : vector<256x4xf32>, vector<4x128xf32>, vector<256x128xf32> -> vector<256x128xf32>
    %c0_3 = arith.constant 0 : index
    %c0_4 = arith.constant 0 : index
    %3 = vector.load %arg2[%c0_3, %c0_4] : memref<4x128xf32, #tpu.memory_space<vmem>>, vector<4x128xf32>
    %cst_5 = arith.constant dense<0.000000e+00> : vector<256x128xf32>
    %4 = tpu.matmul %0, %3, %cst_5 {dimension_numbers = #tpu.dot_dimension_numbers<[1], [0], [0], [1], [0, 0, 1, 1], [], []>} : vector<256x4xf32>, vector<4x128xf32>, vector<256x128xf32> -> vector<256x128xf32>
    %c0_6 = arith.constant 0 : index
    %c0_7 = arith.constant 0 : index
    %5 = vector.load %arg3[%c0_6, %c0_7] : memref<1x128xf32, #tpu.memory_space<vmem>>, vector<1x128xf32>
    %6 = vector.broadcast %5 : vector<1x128xf32> to vector<256x128xf32>
    %7 = arith.addf %4, %6 : vector<256x128xf32>
    %cst_8 = arith.constant 0.000000e+00 : f32
    %8 = vector.broadcast %cst_8 : f32 to vector<256x128xf32>
    %9 = arith.maximumf %7, %8 : vector<256x128xf32>
    %c0_9 = arith.constant 0 : index
    %c0_10 = arith.constant 0 : index
    %10 = vector.load %arg4[%c0_9, %c0_10] : memref<128x128xf32, #tpu.memory_space<vmem>>, vector<128x128xf32>
    %cst_11 = arith.constant dense<0.000000e+00> : vector<256x128xf32>
    %11 = tpu.matmul %9, %10, %cst_11 {dimension_numbers = #tpu.dot_dimension_numbers<[1], [0], [0], [1], [0, 0, 1, 1], [], []>} : vector<256x128xf32>, vector<128x128xf32>, vector<256x128xf32> -> vector<256x128xf32>
    %c0_12 = arith.constant 0 : index
    %c0_13 = arith.constant 0 : index
    %12 = vector.load %arg5[%c0_12, %c0_13] : memref<1x128xf32, #tpu.memory_space<vmem>>, vector<1x128xf32>
    %13 = vector.broadcast %12 : vector<1x128xf32> to vector<256x128xf32>
    %14 = arith.addf %11, %13 : vector<256x128xf32>
    %cst_14 = arith.constant 0.000000e+00 : f32
    %15 = vector.broadcast %cst_14 : f32 to vector<256x128xf32>
    %16 = arith.maximumf %14, %15 : vector<256x128xf32>
    %17 = arith.addf %16, %2 : vector<256x128xf32>
    %cst_15 = arith.constant 0.000000e+00 : f32
    %18 = vector.broadcast %cst_15 : f32 to vector<256x128xf32>
    %19 = arith.maximumf %17, %18 : vector<256x128xf32>
    %20 = vector.extract_strided_slice %19 {offsets = [0, 0], sizes = [256, 4], strides = [1, 1]} : vector<256x128xf32> to vector<256x4xf32>
    %c0_16 = arith.constant 0 : index
    %c0_17 = arith.constant 0 : index
    %21 = vector.load %arg7[%c0_16, %c0_17] : memref<256x4xf32, #tpu.memory_space<vmem>>, vector<256x4xf32>
    tpu.vector_store %arg7[%c0_16, %c0_17], %20 {strides = array<i32>} : memref<256x4xf32, #tpu.memory_space<vmem>>, vector<256x4xf32>,
    return
  }
  func.func @transform_0(%arg0: i32) -> (i32, i32) {
    %c0_i32 = arith.constant 0 : i32
    %c0_i32_0 = arith.constant 0 : i32
    return %arg0, %c0_i32 : i32, i32
  }
  func.func @transform_1(%arg0: i32) -> (i32, i32) {
    %c0_i32 = arith.constant 0 : i32
    %c0_i32_0 = arith.constant 0 : i32
    %c0_i32_1 = arith.constant 0 : i32
    return %c0_i32, %c0_i32_0 : i32, i32
  }
  func.func @transform_2(%arg0: i32) -> (i32, i32) {
    %c0_i32 = arith.constant 0 : i32
    %c0_i32_0 = arith.constant 0 : i32
    %c0_i32_1 = arith.constant 0 : i32
    return %c0_i32, %c0_i32_0 : i32, i32
  }
  func.func @transform_3(%arg0: i32) -> (i32, i32) {
    %c0_i32 = arith.constant 0 : i32
    %c0_i32_0 = arith.constant 0 : i32
    %c0_i32_1 = arith.constant 0 : i32
    return %c0_i32, %c0_i32_0 : i32, i32
  }
  func.func @transform_4(%arg0: i32) -> (i32, i32) {
    %c0_i32 = arith.constant 0 : i32
    %c0_i32_0 = arith.constant 0 : i32
    %c0_i32_1 = arith.constant 0 : i32
    return %c0_i32, %c0_i32_0 : i32, i32
  }
  func.func @transform_5(%arg0: i32) -> (i32, i32) {
    %c0_i32 = arith.constant 0 : i32
    %c0_i32_0 = arith.constant 0 : i32
    %c0_i32_1 = arith.constant 0 : i32
    return %c0_i32, %c0_i32_0 : i32, i32
  }
  func.func @transform_6(%arg0: i32) -> (i32, i32) {
    %c0_i32 = arith.constant 0 : i32
    %c0_i32_0 = arith.constant 0 : i32
    return %arg0, %c0_i32 : i32, i32
  }
}

</mosaic_0001>

<llo_original>
// kernel: _lambda_.1
$region0: #{_lambda_.1}
  #allocation0 [shape = 'u32[]', space=smem, size = 0x4, offset = 0x4, fixed_abs, tag = 'smem constant byte address 0x4 - core index']
  #allocation1 [shape = 'u32[144,128]{1,0:T(1,128)}', space=vmem, size = 0x12000, scoped, tag = 'internal scratch']
  %s0 = inlined_call_operand.vmem [shape: f32[512,4], index: 0, kind: input, shape index: {}]
  %s1 = inlined_call_operand.vmem [shape: f32[4,128], index: 1, kind: input, shape index: {}]
  %s2 = inlined_call_operand.vmem [shape: f32[1,128], index: 2, kind: input, shape index: {}]
  %s3 = inlined_call_operand.vmem [shape: f32[128,128], index: 3, kind: input, shape index: {}]
  %s4 = inlined_call_operand.vmem [shape: f32[1,128], index: 4, kind: input, shape index: {}]
  %s5 = inlined_call_operand.vmem [shape: f32[4,128], index: 5, kind: input, shape index: {}]
  %s6 = inlined_call_operand.vmem [shape: f32[512,4], index: 6, kind: output, shape index: {}]
  %s7 = sld [smem:[#allocation0]]
  $region57: #{_lambda_.1} parent=0
    _
  %s9 = ssub.s32 1, %s7
  %s10 = scalar_select 0, %s9, %s7
  loop: start=0, step=1, limit=4
  $region2: #{_lambda_.1} parent=0 // loop_pre_header
    _
  $region3: #{_lambda_.1} parent=0 // loop_header
    %s12 = sphi 0, %s16
    %p13 = scmp.ge.s32.totalorder %s12, 4
    %s22 = sphi 0, %s24
    %s25 = sphi 0, %s22
    %s26 = sphi 0, %s25
    %s42 = sphi 0, %s26
    %s46 = sphi 0, %s46
    %s48 = sphi 0, %s46
    %s49 = sphi 0, %s48
    %s63 = sphi 0, %s49
    %s67 = sphi 0, %s67
    %s69 = sphi 0, %s67
    %s70 = sphi 0, %s69
    %s84 = sphi 0, %s70
    %s88 = sphi 0, %s88
    %s90 = sphi 0, %s88
    %s91 = sphi 0, %s90
    %s105 = sphi 0, %s91
    %s109 = sphi 0, %s109
    %s111 = sphi 0, %s109
    %s112 = sphi 0, %s111
    %s126 = sphi 0, %s112
    %s130 = sphi 0, %s130
    %s132 = sphi 0, %s130
    %s133 = sphi 0, %s132
    %s147 = sphi 0, %s133
    %s153 = sphi 0, %s155
    %s156 = sphi 0, %s153
    %s157 = sphi 0, %s156
    %s173 = sphi 0, %s157
  $region4: #{_lambda_.1} parent=0 // loop_header_branch
    %15 = sbr.rel (%p13) target = $region8
  $region5: #{_lambda_.1} parent=0 // loop_body
    %s17 = ssub.s32 %s12, 1
    %s18 = ssub.s32 %s12, 2
    %s19 = sadd.s32 %s12, 1
    %s20 = ssub.s32 %s12, %s19
    %p21 = scmp.eq.s32.totalorder %s20, 0
    %s23 = sadd.s32 %s22, 1
    %s24 = scalar_select %p21, %s22, %s23
    %p27 = pneg %p21
    %p28 = scmp.eq.s32.totalorder %s12, 1
    %p29 = por %p27, %p28
    %p30 = scmp.ne.s32.totalorder %s22, %s25
    %p31 = scmp.eq.s32.totalorder %s12, 0
    %p32 = por %p30, %p31
    %p33 = scmp.ne.s32.totalorder %s22, %s25
    %p34 = scmp.eq.s32.totalorder %s17, 1
    %p35 = por %p33, %p34
    %p36 = scmp.ne.s32.totalorder %s25, %s26
    %p37 = scmp.eq.s32.totalorder %s17, 0
    %p38 = por %p36, %p37
    %p39 = scmp.ne.s32.totalorder %s25, %s26
    %p40 = scmp.eq.s32.totalorder %s18, 1
    %p41 = por %p39, %p40
    %p43 = scmp.ne.s32.totalorder %s26, %s42
    %p44 = scmp.eq.s32.totalorder %s18, 0
    %p45 = por %p43, %p44
    %s47 = sadd.s32 %s46, 1
    %p50 = scmp.eq.s32.totalorder %s12, 1
    %p51 = scmp.ne.s32.totalorder %s46, %s48
    %p52 = scmp.eq.s32.totalorder %s12, 0
    %p53 = por %p51, %p52
    %p54 = scmp.ne.s32.totalorder %s46, %s48
    %p55 = scmp.eq.s32.totalorder %s17, 1
    %p56 = por %p54, %p55
    %p57 = scmp.ne.s32.totalorder %s48, %s49
    %p58 = scmp.eq.s32.totalorder %s17, 0
    %p59 = por %p57, %p58
    %p60 = scmp.ne.s32.totalorder %s48, %s49
    %p61 = scmp.eq.s32.totalorder %s18, 1
    %p62 = por %p60, %p61
    %p64 = scmp.ne.s32.totalorder %s49, %s63
    %p65 = scmp.eq.s32.totalorder %s18, 0
    %p66 = por %p64, %p65
    %s68 = sadd.s32 %s67, 1
    %p71 = scmp.eq.s32.totalorder %s12, 1
    %p72 = scmp.ne.s32.totalorder %s67, %s69
    %p73 = scmp.eq.s32.totalorder %s12, 0
    %p74 = por %p72, %p73
    %p75 = scmp.ne.s32.totalorder %s67, %s69
    %p76 = scmp.eq.s32.totalorder %s17, 1
    %p77 = por %p75, %p76
    %p78 = scmp.ne.s32.totalorder %s69, %s70
    %p79 = scmp.eq.s32.totalorder %s17, 0
    %p80 = por %p78, %p79
    %p81 = scmp.ne.s32.totalorder %s69, %s70
    %p82 = scmp.eq.s32.totalorder %s18, 1
    %p83 = por %p81, %p82
    %p85 = scmp.ne.s32.totalorder %s70, %s84
    %p86 = scmp.eq.s32.totalorder %s18, 0
    %p87 = por %p85, %p86
    %s89 = sadd.s32 %s88, 1
    %p92 = scmp.eq.s32.totalorder %s12, 1
    %p93 = scmp.ne.s32.totalorder %s88, %s90
    %p94 = scmp.eq.s32.totalorder %s12, 0
    %p95 = por %p93, %p94
    %p96 = scmp.ne.s32.totalorder %s88, %s90
    %p97 = scmp.eq.s32.totalorder %s17, 1
    %p98 = por %p96, %p97
    %p99 = scmp.ne.s32.totalorder %s90, %s91
    %p100 = scmp.eq.s32.totalorder %s17, 0
    %p101 = por %p99, %p100
    %p102 = scmp.ne.s32.totalorder %s90, %s91
    %p103 = scmp.eq.s32.totalorder %s18, 1
    %p104 = por %p102, %p103
    %p106 = scmp.ne.s32.totalorder %s91, %s105
    %p107 = scmp.eq.s32.totalorder %s18, 0
    %p108 = por %p106, %p107
    %s110 = sadd.s32 %s109, 1
    %p113 = scmp.eq.s32.totalorder %s12, 1
    %p114 = scmp.ne.s32.totalorder %s109, %s111
    %p115 = scmp.eq.s32.totalorder %s12, 0
    %p116 = por %p114, %p115
    %p117 = scmp.ne.s32.totalorder %s109, %s111
    %p118 = scmp.eq.s32.totalorder %s17, 1
    %p119 = por %p117, %p118
    %p120 = scmp.ne.s32.totalorder %s111, %s112
    %p121 = scmp.eq.s32.totalorder %s17, 0
    %p122 = por %p120, %p121
    %p123 = scmp.ne.s32.totalorder %s111, %s112
    %p124 = scmp.eq.s32.totalorder %s18, 1
    %p125 = por %p123, %p124
    %p127 = scmp.ne.s32.totalorder %s112, %s126
    %p128 = scmp.eq.s32.totalorder %s18, 0
    %p129 = por %p127, %p128
    %s131 = sadd.s32 %s130, 1
    %p134 = scmp.eq.s32.totalorder %s12, 1
    %p135 = scmp.ne.s32.totalorder %s130, %s132
    %p136 = scmp.eq.s32.totalorder %s12, 0
    %p137 = por %p135, %p136
    %p138 = scmp.ne.s32.totalorder %s130, %s132
    %p139 = scmp.eq.s32.totalorder %s17, 1
    %p140 = por %p138, %p139
    %p141 = scmp.ne.s32.totalorder %s132, %s133
    %p142 = scmp.eq.s32.totalorder %s17, 0
    %p143 = por %p141, %p142
    %p144 = scmp.ne.s32.totalorder %s132, %s133
    %p145 = scmp.eq.s32.totalorder %s18, 1
    %p146 = por %p144, %p145
    %p148 = scmp.ne.s32.totalorder %s133, %s147
    %p149 = scmp.eq.s32.totalorder %s18, 0
    %p150 = por %p148, %p149
    %s151 = ssub.s32 %s12, %s19
    %p152 = scmp.eq.s32.totalorder %s151, 0
    %s154 = sadd.s32 %s153, 1
    %s155 = scalar_select %p152, %s153, %s154
    %p158 = pneg %p152
    %p159 = scmp.eq.s32.totalorder %s12, 1
    %p160 = por %p158, %p159
    %p161 = scmp.ne.s32.totalorder %s153, %s156
    %p162 = scmp.eq.s32.totalorder %s12, 0
    %p163 = por %p161, %p162
    %p164 = scmp.ne.s32.totalorder %s153, %s156
    %p165 = scmp.eq.s32.totalorder %s17, 1
    %p166 = por %p164, %p165
    %p167 = scmp.ne.s32.totalorder %s156, %s157
    %p168 = scmp.eq.s32.totalorder %s17, 0
    %p169 = por %p167, %p168
    %p170 = scmp.ne.s32.totalorder %s156, %s157
    %p171 = scmp.eq.s32.totalorder %s18, 1
    %p172 = por %p170, %p171
    %p174 = scmp.ne.s32.totalorder %s157, %s173
    %p175 = scmp.eq.s32.totalorder %s18, 0
    %p176 = por %p174, %p175
    %p177 = scmp.le.s32.totalorder 1, %s12
    %p178 = scmp.lt.s32.totalorder %s12, 3
    %p179 = pnand %p177, %p178
    %p180 = pneg %p179
    // Predicated region
    $region9: #{_lambda_.1} parent=5 // pred_check
      _
    $region10: #{_lambda_.1} parent=5 // pred_check_branch
      %182 = sbr.rel (%p179) target = $region12
    $region11: #{_lambda_.1} parent=5 // pred_region
      %s183 = ssub.s32 %s12, 1
      // Predicated region
      $region13: #{_lambda_.1} parent=11 // pred_check
        %p184 = pneg %p59
      $region14: #{_lambda_.1} parent=11 // pred_check_branch
        %186 = sbr.rel (%p184) target = $region16
      $region15: #{_lambda_.1} parent=11 // pred_region
        _
      $region16: #{_lambda_.1} parent=11 // pred_fallthru
        _
      // Predicated region
      $region17: #{_lambda_.1} parent=11 // pred_check
        %p187 = pneg %p80
      $region18: #{_lambda_.1} parent=11 // pred_check_branch
        %189 = sbr.rel (%p187) target = $region20
      $region19: #{_lambda_.1} parent=11 // pred_region
        _
      $region20: #{_lambda_.1} parent=11 // pred_fallthru
        _
      // Predicated region
      $region21: #{_lambda_.1} parent=11 // pred_check
        %p190 = pneg %p101
      $region22: #{_lambda_.1} parent=11 // pred_check_branch
        %192 = sbr.rel (%p190) target = $region24
      $region23: #{_lambda_.1} parent=11 // pred_region
        _
      $region24: #{_lambda_.1} parent=11 // pred_fallthru
        _
      // Predicated region
      $region25: #{_lambda_.1} parent=11 // pred_check
        %p193 = pneg %p122
      $region26: #{_lambda_.1} parent=11 // pred_check_branch
        %195 = sbr.rel (%p193) target = $region28
      $region27: #{_lambda_.1} parent=11 // pred_region
        _
      $region28: #{_lambda_.1} parent=11 // pred_fallthru
        _
      // Predicated region
      $region29: #{_lambda_.1} parent=11 // pred_check
        %p196 = pneg %p143
      $region30: #{_lambda_.1} parent=11 // pred_check_branch
        %198 = sbr.rel (%p196) target = $region32
      $region31: #{_lambda_.1} parent=11 // pred_region
        _
      $region32: #{_lambda_.1} parent=11 // pred_fallthru
        _
    $region12: #{_lambda_.1} parent=5 // pred_fallthru
      _
    %p199 = scmp.lt.s32.totalorder %s12, 2
    // Predicated region
    $region33: #{_lambda_.1} parent=5 // pred_check
      %p200 = pneg %p199
    $region34: #{_lambda_.1} parent=5 // pred_check_branch
      %202 = sbr.rel (%p200) target = $region36
    $region35: #{_lambda_.1} parent=5 // pred_region
      // Predicated region
      $region37: #{_lambda_.1} parent=35 // pred_check
        %p203 = pneg %p32
      $region38: #{_lambda_.1} parent=35 // pred_check_branch
        %205 = sbr.rel (%p203) target = $region40
      $region39: #{_lambda_.1} parent=35 // pred_region
        %s206 = smul.u32 32, %s12
        %p207 = scmp.lt.s32.totalorder %s206, 63
        %s208 = scalar_select %p207, %s206, 63
        %s209 = smul.addr %s208, 8
        %s210 = scalar_lea.vmem %s0, %s209
        %s211 = smul.u32 32, %s12
      $region40: #{_lambda_.1} parent=35 // pred_fallthru
        _
    $region36: #{_lambda_.1} parent=5 // pred_fallthru
      _
    %p212 = scmp.le.s32.totalorder 1, %s12
    %p213 = scmp.lt.s32.totalorder %s12, 3
    %p214 = pnand %p212, %p213
    %p215 = pneg %p214
    // Predicated region
    $region41: #{_lambda_.1} parent=5 // pred_check
      _
    $region42: #{_lambda_.1} parent=5 // pred_check_branch
      %217 = sbr.rel (%p214) target = $region44
    $region43: #{_lambda_.1} parent=5 // pred_region
      %s218 = ssub.s32 %s12, 1
      %s219 = smul.u32 32, %s17
      %p220 = scmp.lt.s32.totalorder %s219, 63
      %s221 = scalar_select %p220, %s219, 63
      %s222 = smul.addr %s221, 8
      %s223 = scalar_lea.vmem %s0, %s222
      %p224 = pneg %p38
      %p225 = pneg %p35
      %p226 = pneg %p59
      %p227 = pneg %p56
      %p228 = pneg %p80
      %p229 = pneg %p77
      %p230 = pneg %p101
      %p231 = pneg %p98
      %p232 = pneg %p122
      %p233 = pneg %p119
      %p234 = pneg %p143
      %p235 = pneg %p140
      %p236 = pneg %p169
      %p237 = pneg %p166
      %s238 = smul.u32 32, %s17
      %p239 = scmp.lt.s32.totalorder %s238, 63
      %s240 = scalar_select %p239, %s238, 63
      %s241 = smul.addr %s240, 8
      %s242 = scalar_lea.vmem %s6, %s241
      %s243 = smul.u32 32, %s17
      %p244 = scmp.lt.s32.totalorder %s243, 63
      %s245 = scalar_select %p244, %s243, 63
      %s246 = smul.addr %s245, 8
      %s247 = scalar_lea.vmem %s0, %s246
      %s248 = smul.u32 32, %s17
      %s249 = smul.u32 32, %s17
      %p250 = scmp.lt.s32.totalorder %s249, 63
      %s251 = scalar_select %p250, %s249, 63
      %s252 = smul.addr %s251, 8
      %s253 = scalar_lea.vmem %s6, %s252
      %s254 = smul.u32 32, %s17
      %v255 = vld [vmem:[%s247] sm:$0xff]
      %v256 = vld [vmem:[%s247 + $0x8] sm:$0xff]
      %v257 = vld [vmem:[%s247 + $0x10] sm:$0xff]
      %v258 = vld [vmem:[%s247 + $0x18] sm:$0xff]
      %v259 = vld [vmem:[%s247 + $0x20] sm:$0xff]
      %v260 = vld [vmem:[%s247 + $0x28] sm:$0xff]
      %v261 = vld [vmem:[%s247 + $0x30] sm:$0xff]
      %v262 = vld [vmem:[%s247 + $0x38] sm:$0xff]
      %v263 = vld [vmem:[%s247 + $0x40] sm:$0xff]
      %v264 = vld [vmem:[%s247 + $0x48] sm:$0xff]
      %v265 = vld [vmem:[%s247 + $0x50] sm:$0xff]
      %v266 = vld [vmem:[%s247 + $0x58] sm:$0xff]
      %v267 = vld [vmem:[%s247 + $0x60] sm:$0xff]
      %v268 = vld [vmem:[%s247 + $0x68] sm:$0xff]
      %v269 = vld [vmem:[%s247 + $0x70] sm:$0xff]
      %v270 = vld [vmem:[%s247 + $0x78] sm:$0xff]
      %v271 = vld [vmem:[%s247 + $0x80] sm:$0xff]
      %v272 = vld [vmem:[%s247 + $0x88] sm:$0xff]
      %v273 = vld [vmem:[%s247 + $0x90] sm:$0xff]
      %v274 = vld [vmem:[%s247 + $0x98] sm:$0xff]
      %v275 = vld [vmem:[%s247 + $0xa0] sm:$0xff]
      %v276 = vld [vmem:[%s247 + $0xa8] sm:$0xff]
      %v277 = vld [vmem:[%s247 + $0xb0] sm:$0xff]
      %v278 = vld [vmem:[%s247 + $0xb8] sm:$0xff]
      %v279 = vld [vmem:[%s247 + $0xc0] sm:$0xff]
      %v280 = vld [vmem:[%s247 + $0xc8] sm:$0xff]
      %v281 = vld [vmem:[%s247 + $0xd0] sm:$0xff]
      %v282 = vld [vmem:[%s247 + $0xd8] sm:$0xff]
      %v283 = vld [vmem:[%s247 + $0xe0] sm:$0xff]
      %v284 = vld [vmem:[%s247 + $0xe8] sm:$0xff]
      %v285 = vld [vmem:[%s247 + $0xf0] sm:$0xff]
      %v286 = vld [vmem:[%s247 + $0xf8] sm:$0xff]
      %v287 = vld [vmem:[%s5] sm:$0xf]
      %vm288 = vcmask 31744
      %v290 = vsel %vm288, %v255, 0
      %v293 = vsel %vm288, %v256, 0
      %v296 = vsel %vm288, %v257, 0
      %v299 = vsel %vm288, %v258, 0
      %v302 = vsel %vm288, %v259, 0
      %v305 = vsel %vm288, %v260, 0
      %v308 = vsel %vm288, %v261, 0
      %v311 = vsel %vm288, %v262, 0
      %v314 = vsel %vm288, %v263, 0
      %v317 = vsel %vm288, %v264, 0
      %v320 = vsel %vm288, %v265, 0
      %v323 = vsel %vm288, %v266, 0
      %v326 = vsel %vm288, %v267, 0
      %v329 = vsel %vm288, %v268, 0
      %v332 = vsel %vm288, %v269, 0
      %v335 = vsel %vm288, %v270, 0
      %v338 = vsel %vm288, %v271, 0
      %v341 = vsel %vm288, %v272, 0
      %v344 = vsel %vm288, %v273, 0
      %v347 = vsel %vm288, %v274, 0
      %v350 = vsel %vm288, %v275, 0
      %v353 = vsel %vm288, %v276, 0
      %v356 = vsel %vm288, %v277, 0
      %v359 = vsel %vm288, %v278, 0
      %v362 = vsel %vm288, %v279, 0
      %v365 = vsel %vm288, %v280, 0
      %v368 = vsel %vm288, %v281, 0
      %v371 = vsel %vm288, %v282, 0
      %v374 = vsel %vm288, %v283, 0
      %v377 = vsel %vm288, %v284, 0
      %v380 = vsel %vm288, %v285, 0
      %v383 = vsel %vm288, %v286, 0
      %vm385 = vcmask 1043456
      %v387 = vsel %vm385, %v287, 0
      %389 = vmatprep.subr.mxu0 0.0
      %390 = vmatpush1.msra.mxu0 0.0
      %391 = vmatprep.subr.mxu0 0.0
      %392 = vmatpush1.msra.mxu0 0.0
      %393 = vmatprep.subr.mxu0 0.0
      %394 = vmatpush1.msra.mxu0 0.0
      %395 = vmatprep.subr.mxu0 0.0
      %396 = vmatpush1.msra.mxu0 0.0
      %397 = vmatprep.subr.mxu0 0.0
      %398 = vmatpush1.msra.mxu0 0.0
      %399 = vmatprep.subr.mxu0 0.0
      %400 = vmatpush1.msra.mxu0 0.0
      %401 = vmatprep.subr.mxu0 0.0
      %402 = vmatpush1.msra.mxu0 0.0
      %403 = vmatprep.subr.mxu0 0.0
      %404 = vmatpush1.msra.mxu0 0.0
      %405 = vmatprep.subr.mxu0 0.0
      %406 = vmatpush1.msra.mxu0 0.0
      %407 = vmatprep.subr.mxu0 0.0
      %408 = vmatpush1.msra.mxu0 0.0
      %409 = vmatprep.subr.mxu0 0.0
      %410 = vmatpush1.msra.mxu0 0.0
      %411 = vmatprep.subr.mxu0 0.0
      %412 = vmatpush1.msra.mxu0 0.0
      %413 = vmatprep.subr.mxu0 0.0
      %414 = vmatpush1.msra.mxu0 0.0
      %415 = vmatprep.subr.mxu0 0.0
      %416 = vmatpush1.msra.mxu0 0.0
      %417 = vmatprep.subr.mxu0 0.0
      %418 = vmatpush1.msra.mxu0 0.0
      %419 = vmatprep.subr.mxu0 0.0
      %420 = vmatpush1.msra.mxu0 %v387
      %421 = vmatprep.subr.mxu0 0.0
      %422 = vmatpush2.msra.mxu0 0.0
      %423 = vmatprep.subr.mxu0 0.0
      %424 = vmatpush2.msra.mxu0 0.0
      %425 = vmatprep.subr.mxu0 0.0
      %426 = vmatpush2.msra.mxu0 0.0
      %427 = vmatprep.subr.mxu0 0.0
      %428 = vmatpush2.msra.mxu0 0.0
      %429 = vmatprep.subr.mxu0 0.0
      %430 = vmatpush2.msra.mxu0 0.0
      %431 = vmatprep.subr.mxu0 0.0
      %432 = vmatpush2.msra.mxu0 0.0
      %433 = vmatprep.subr.mxu0 0.0
      %434 = vmatpush2.msra.mxu0 0.0
      %435 = vmatprep.subr.mxu0 0.0
      %436 = vmatpush2.msra.mxu0 0.0
      %437 = vmatprep.subr.mxu0 0.0
      %438 = vmatpush2.msra.mxu0 0.0
      %439 = vmatprep.subr.mxu0 0.0
      %440 = vmatpush2.msra.mxu0 0.0
      %441 = vmatprep.subr.mxu0 0.0
      %442 = vmatpush2.msra.mxu0 0.0
      %443 = vmatprep.subr.mxu0 0.0
      %444 = vmatpush2.msra.mxu0 0.0
      %445 = vmatprep.subr.mxu0 0.0
      %446 = vmatpush2.msra.mxu0 0.0
      %447 = vmatprep.subr.mxu0 0.0
      %448 = vmatpush2.msra.mxu0 0.0
      %449 = vmatprep.subr.mxu0 0.0
      %450 = vmatpush2.msra.mxu0 0.0
      %451 = vmatprep.subr.mxu0 0.0
      %452 = vmatpush2.msra.mxu0 0.0
      %453 = vmatprep.mubr.f32.mxu0 0.0
      %454 = vmatmul.mubr.f32.gmra.mxu0 %v290
      %v455 = vpop.f32.mrf.mxu0
      %v456 = vadd.f32 0.0, %v455
      %v457 = vpop.f32.mrf.mxu0
      %458 = vmatprep.mubr.f32.mxu0 0.0
      %459 = vmatmul.mubr.f32.gmra.mxu0 %v293
      %v460 = vpop.f32.mrf.mxu0
      %v461 = vadd.f32 0.0, %v460
      %v462 = vpop.f32.mrf.mxu0
      %463 = vmatprep.mubr.f32.mxu0 0.0
      %464 = vmatmul.mubr.f32.gmra.mxu0 %v296
      %v465 = vpop.f32.mrf.mxu0
      %v466 = vadd.f32 0.0, %v465
      %v467 = vpop.f32.mrf.mxu0
      %468 = vmatprep.mubr.f32.mxu0 0.0
      %469 = vmatmul.mubr.f32.gmra.mxu0 %v299
      %v470 = vpop.f32.mrf.mxu0
      %v471 = vadd.f32 0.0, %v470
      %v472 = vpop.f32.mrf.mxu0
      %473 = vmatprep.mubr.f32.mxu0 0.0
      %474 = vmatmul.mubr.f32.gmra.mxu0 %v302
      %v475 = vpop.f32.mrf.mxu0
      %v476 = vadd.f32 0.0, %v475
      %v477 = vpop.f32.mrf.mxu0
      %478 = vmatprep.mubr.f32.mxu0 0.0
      %479 = vmatmul.mubr.f32.gmra.mxu0 %v305
      %v480 = vpop.f32.mrf.mxu0
      %v481 = vadd.f32 0.0, %v480
      %v482 = vpop.f32.mrf.mxu0
      %483 = vmatprep.mubr.f32.mxu0 0.0
      %484 = vmatmul.mubr.f32.gmra.mxu0 %v308
      %v485 = vpop.f32.mrf.mxu0
      %v486 = vadd.f32 0.0, %v485
      %v487 = vpop.f32.mrf.mxu0
      %488 = vmatprep.mubr.f32.mxu0 0.0
      %489 = vmatmul.mubr.f32.gmra.mxu0 %v311
      %v490 = vpop.f32.mrf.mxu0
      %v491 = vadd.f32 0.0, %v490
      %v492 = vpop.f32.mrf.mxu0
      %493 = vmatprep.mubr.f32.mxu0 0.0
      %494 = vmatmul.mubr.f32.gmra.mxu0 %v314
      %v495 = vpop.f32.mrf.mxu0
      %v496 = vadd.f32 0.0, %v495
      %v497 = vpop.f32.mrf.mxu0
      %498 = vmatprep.mubr.f32.mxu0 0.0
      %499 = vmatmul.mubr.f32.gmra.mxu0 %v317
      %v500 = vpop.f32.mrf.mxu0
      %v501 = vadd.f32 0.0, %v500
      %v502 = vpop.f32.mrf.mxu0
      %503 = vmatprep.mubr.f32.mxu0 0.0
      %504 = vmatmul.mubr.f32.gmra.mxu0 %v320
      %v505 = vpop.f32.mrf.mxu0
      %v506 = vadd.f32 0.0, %v505
      %v507 = vpop.f32.mrf.mxu0
      %508 = vmatprep.mubr.f32.mxu0 0.0
      %509 = vmatmul.mubr.f32.gmra.mxu0 %v323
      %v510 = vpop.f32.mrf.mxu0
      %v511 = vadd.f32 0.0, %v510
      %v512 = vpop.f32.mrf.mxu0
      %513 = vmatprep.mubr.f32.mxu0 0.0
      %514 = vmatmul.mubr.f32.gmra.mxu0 %v326
      %v515 = vpop.f32.mrf.mxu0
      %v516 = vadd.f32 0.0, %v515
      %v517 = vpop.f32.mrf.mxu0
      %518 = vmatprep.mubr.f32.mxu0 0.0
      %519 = vmatmul.mubr.f32.gmra.mxu0 %v329
      %v520 = vpop.f32.mrf.mxu0
      %v521 = vadd.f32 0.0, %v520
      %v522 = vpop.f32.mrf.mxu0
      %523 = vmatprep.mubr.f32.mxu0 0.0
      %524 = vmatmul.mubr.f32.gmra.mxu0 %v332
      %v525 = vpop.f32.mrf.mxu0
      %v526 = vadd.f32 0.0, %v525
      %v527 = vpop.f32.mrf.mxu0
      %528 = vmatprep.mubr.f32.mxu0 0.0
      %529 = vmatmul.mubr.f32.gmra.mxu0 %v335
      %v530 = vpop.f32.mrf.mxu0
      %v531 = vadd.f32 0.0, %v530
      %v532 = vpop.f32.mrf.mxu0
      %533 = vmatprep.mubr.f32.mxu0 0.0
      %534 = vmatmul.mubr.f32.gmra.mxu0 %v338
      %v535 = vpop.f32.mrf.mxu0
      %v536 = vadd.f32 0.0, %v535
      %v537 = vpop.f32.mrf.mxu0
      %538 = vmatprep.mubr.f32.mxu0 0.0
      %539 = vmatmul.mubr.f32.gmra.mxu0 %v341
      %v540 = vpop.f32.mrf.mxu0
      %v541 = vadd.f32 0.0, %v540
      %v542 = vpop.f32.mrf.mxu0
      %543 = vmatprep.mubr.f32.mxu0 0.0
      %544 = vmatmul.mubr.f32.gmra.mxu0 %v344
      %v545 = vpop.f32.mrf.mxu0
      %v546 = vadd.f32 0.0, %v545
      %v547 = vpop.f32.mrf.mxu0
      %548 = vmatprep.mubr.f32.mxu0 0.0
      %549 = vmatmul.mubr.f32.gmra.mxu0 %v347
      %v550 = vpop.f32.mrf.mxu0
      %v551 = vadd.f32 0.0, %v550
      %v552 = vpop.f32.mrf.mxu0
      %553 = vmatprep.mubr.f32.mxu0 0.0
      %554 = vmatmul.mubr.f32.gmra.mxu0 %v350
      %v555 = vpop.f32.mrf.mxu0
      %v556 = vadd.f32 0.0, %v555
      %v557 = vpop.f32.mrf.mxu0
      %558 = vmatprep.mubr.f32.mxu0 0.0
      %559 = vmatmul.mubr.f32.gmra.mxu0 %v353
      %v560 = vpop.f32.mrf.mxu0
      %v561 = vadd.f32 0.0, %v560
      %v562 = vpop.f32.mrf.mxu0
      %563 = vmatprep.mubr.f32.mxu0 0.0
      %564 = vmatmul.mubr.f32.gmra.mxu0 %v356
      %v565 = vpop.f32.mrf.mxu0
      %v566 = vadd.f32 0.0, %v565
      %v567 = vpop.f32.mrf.mxu0
      %568 = vmatprep.mubr.f32.mxu0 0.0
      %569 = vmatmul.mubr.f32.gmra.mxu0 %v359
      %v570 = vpop.f32.mrf.mxu0
      %v571 = vadd.f32 0.0, %v570
      %v572 = vpop.f32.mrf.mxu0
      %573 = vmatprep.mubr.f32.mxu0 0.0
      %574 = vmatmul.mubr.f32.gmra.mxu0 %v362
      %v575 = vpop.f32.mrf.mxu0
      %v576 = vadd.f32 0.0, %v575
      %v577 = vpop.f32.mrf.mxu0
      %578 = vmatprep.mubr.f32.mxu0 0.0
      %579 = vmatmul.mubr.f32.gmra.mxu0 %v365
      %v580 = vpop.f32.mrf.mxu0
      %v581 = vadd.f32 0.0, %v580
      %v582 = vpop.f32.mrf.mxu0
      %583 = vmatprep.mubr.f32.mxu0 0.0
      %584 = vmatmul.mubr.f32.gmra.mxu0 %v368
      %v585 = vpop.f32.mrf.mxu0
      %v586 = vadd.f32 0.0, %v585
      %v587 = vpop.f32.mrf.mxu0
      %588 = vmatprep.mubr.f32.mxu0 0.0
      %589 = vmatmul.mubr.f32.gmra.mxu0 %v371
      %v590 = vpop.f32.mrf.mxu0
      %v591 = vadd.f32 0.0, %v590
      %v592 = vpop.f32.mrf.mxu0
      %593 = vmatprep.mubr.f32.mxu0 0.0
      %594 = vmatmul.mubr.f32.gmra.mxu0 %v374
      %v595 = vpop.f32.mrf.mxu0
      %v596 = vadd.f32 0.0, %v595
      %v597 = vpop.f32.mrf.mxu0
      %598 = vmatprep.mubr.f32.mxu0 0.0
      %599 = vmatmul.mubr.f32.gmra.mxu0 %v377
      %v600 = vpop.f32.mrf.mxu0
      %v601 = vadd.f32 0.0, %v600
      %v602 = vpop.f32.mrf.mxu0
      %603 = vmatprep.mubr.f32.mxu0 0.0
      %604 = vmatmul.mubr.f32.gmra.mxu0 %v380
      %v605 = vpop.f32.mrf.mxu0
      %v606 = vadd.f32 0.0, %v605
      %v607 = vpop.f32.mrf.mxu0
      %608 = vmatprep.mubr.f32.mxu0 0.0
      %609 = vmatmul.mubr.f32.gmra.mxu0 %v383
      %v610 = vpop.f32.mrf.mxu0
      %v611 = vadd.f32 0.0, %v610
      %v612 = vpop.f32.mrf.mxu0
      %613 = vdwg.mxu0
      %v614 = vld [vmem:[%s1] sm:$0xf]
      %v615 = vld [vmem:[%s2] sm:$0x1]
      %v617 = vlaneseq
      %v618 = vshrl.u32 %v617, 7
      %v619 = vsub.s32 0, %v618
      %v620 = vrot.slane %v615, %v619
      %v623 = vsel %vm385, %v614, 0
      %625 = vmatprep.subr.mxu0 0.0
      %626 = vmatpush1.msra.mxu0 0.0
      %627 = vmatprep.subr.mxu0 0.0
      %628 = vmatpush1.msra.mxu0 0.0
      %629 = vmatprep.subr.mxu0 0.0
      %630 = vmatpush1.msra.mxu0 0.0
      %631 = vmatprep.subr.mxu0 0.0
      %632 = vmatpush1.msra.mxu0 0.0
      %633 = vmatprep.subr.mxu0 0.0
      %634 = vmatpush1.msra.mxu0 0.0
      %635 = vmatprep.subr.mxu0 0.0
      %636 = vmatpush1.msra.mxu0 0.0
      %637 = vmatprep.subr.mxu0 0.0
      %638 = vmatpush1.msra.mxu0 0.0
      %639 = vmatprep.subr.mxu0 0.0
      %640 = vmatpush1.msra.mxu0 0.0
      %641 = vmatprep.subr.mxu0 0.0
      %642 = vmatpush1.msra.mxu0 0.0
      %643 = vmatprep.subr.mxu0 0.0
      %644 = vmatpush1.msra.mxu0 0.0
      %645 = vmatprep.subr.mxu0 0.0
      %646 = vmatpush1.msra.mxu0 0.0
      %647 = vmatprep.subr.mxu0 0.0
      %648 = vmatpush1.msra.mxu0 0.0
      %649 = vmatprep.subr.mxu0 0.0
      %650 = vmatpush1.msra.mxu0 0.0
      %651 = vmatprep.subr.mxu0 0.0
      %652 = vmatpush1.msra.mxu0 0.0
      %653 = vmatprep.subr.mxu0 0.0
      %654 = vmatpush1.msra.mxu0 0.0
      %655 = vmatprep.subr.mxu0 0.0
      %656 = vmatpush1.msra.mxu0 %v623
      %657 = vmatprep.subr.mxu0 0.0
      %658 = vmatpush2.msra.mxu0 0.0
      %659 = vmatprep.subr.mxu0 0.0
      %660 = vmatpush2.msra.mxu0 0.0
      %661 = vmatprep.subr.mxu0 0.0
      %662 = vmatpush2.msra.mxu0 0.0
      %663 = vmatprep.subr.mxu0 0.0
      %664 = vmatpush2.msra.mxu0 0.0
      %665 = vmatprep.subr.mxu0 0.0
      %666 = vmatpush2.msra.mxu0 0.0
      %667 = vmatprep.subr.mxu0 0.0
      %668 = vmatpush2.msra.mxu0 0.0
      %669 = vmatprep.subr.mxu0 0.0
      %670 = vmatpush2.msra.mxu0 0.0
      %671 = vmatprep.subr.mxu0 0.0
      %672 = vmatpush2.msra.mxu0 0.0
      %673 = vmatprep.subr.mxu0 0.0
      %674 = vmatpush2.msra.mxu0 0.0
      %675 = vmatprep.subr.mxu0 0.0
      %676 = vmatpush2.msra.mxu0 0.0
      %677 = vmatprep.subr.mxu0 0.0
      %678 = vmatpush2.msra.mxu0 0.0
      %679 = vmatprep.subr.mxu0 0.0
      %680 = vmatpush2.msra.mxu0 0.0
      %681 = vmatprep.subr.mxu0 0.0
      %682 = vmatpush2.msra.mxu0 0.0
      %683 = vmatprep.subr.mxu0 0.0
      %684 = vmatpush2.msra.mxu0 0.0
      %685 = vmatprep.subr.mxu0 0.0
      %686 = vmatpush2.msra.mxu0 0.0
      %687 = vmatprep.subr.mxu0 0.0
      %688 = vmatpush2.msra.mxu0 0.0
      %689 = vmatprep.mubr.f32.mxu0 0.0
      %690 = vmatmul.mubr.f32.gmra.mxu0 %v290
      %v691 = vpop.f32.mrf.mxu0
      %v692 = vadd.f32 %v620, %v691
      %v693 = vpop.f32.mrf.mxu0
      %694 = vmatprep.mubr.f32.mxu0 0.0
      %695 = vmatmul.mubr.f32.gmra.mxu0 %v293
      %v696 = vpop.f32.mrf.mxu0
      %v697 = vadd.f32 %v620, %v696
      %v698 = vpop.f32.mrf.mxu0
      %699 = vmatprep.mubr.f32.mxu0 0.0
      %700 = vmatmul.mubr.f32.gmra.mxu0 %v296
      %v701 = vpop.f32.mrf.mxu0
      %v702 = vadd.f32 %v620, %v701
      %v703 = vpop.f32.mrf.mxu0
      %704 = vmatprep.mubr.f32.mxu0 0.0
      %705 = vmatmul.mubr.f32.gmra.mxu0 %v299
      %v706 = vpop.f32.mrf.mxu0
      %v707 = vadd.f32 %v620, %v706
      %v708 = vpop.f32.mrf.mxu0
      %709 = vmatprep.mubr.f32.mxu0 0.0
      %710 = vmatmul.mubr.f32.gmra.mxu0 %v302
      %v711 = vpop.f32.mrf.mxu0
      %v712 = vadd.f32 %v620, %v711
      %v713 = vpop.f32.mrf.mxu0
      %714 = vmatprep.mubr.f32.mxu0 0.0
      %715 = vmatmul.mubr.f32.gmra.mxu0 %v305
      %v716 = vpop.f32.mrf.mxu0
      %v717 = vadd.f32 %v620, %v716
      %v718 = vpop.f32.mrf.mxu0
      %719 = vmatprep.mubr.f32.mxu0 0.0
      %720 = vmatmul.mubr.f32.gmra.mxu0 %v308
      %v721 = vpop.f32.mrf.mxu0
      %v722 = vadd.f32 %v620, %v721
      %v723 = vpop.f32.mrf.mxu0
      %724 = vmatprep.mubr.f32.mxu0 0.0
      %725 = vmatmul.mubr.f32.gmra.mxu0 %v311
      %v726 = vpop.f32.mrf.mxu0
      %v727 = vadd.f32 %v620, %v726
      %v728 = vpop.f32.mrf.mxu0
      %729 = vmatprep.mubr.f32.mxu0 0.0
      %730 = vmatmul.mubr.f32.gmra.mxu0 %v314
      %v731 = vpop.f32.mrf.mxu0
      %v732 = vadd.f32 %v620, %v731
      %v733 = vpop.f32.mrf.mxu0
      %734 = vmatprep.mubr.f32.mxu0 0.0
      %735 = vmatmul.mubr.f32.gmra.mxu0 %v317
      %v736 = vpop.f32.mrf.mxu0
      %v737 = vadd.f32 %v620, %v736
      %v738 = vpop.f32.mrf.mxu0
      %739 = vmatprep.mubr.f32.mxu0 0.0
      %740 = vmatmul.mubr.f32.gmra.mxu0 %v320
      %v741 = vpop.f32.mrf.mxu0
      %v742 = vadd.f32 %v620, %v741
      %v743 = vpop.f32.mrf.mxu0
      %744 = vmatprep.mubr.f32.mxu0 0.0
      %745 = vmatmul.mubr.f32.gmra.mxu0 %v323
      %v746 = vpop.f32.mrf.mxu0
      %v747 = vadd.f32 %v620, %v746
      %v748 = vpop.f32.mrf.mxu0
      %749 = vmatprep.mubr.f32.mxu0 0.0
      %750 = vmatmul.mubr.f32.gmra.mxu0 %v326
      %v751 = vpop.f32.mrf.mxu0
      %v752 = vadd.f32 %v620, %v751
      %v753 = vpop.f32.mrf.mxu0
      %754 = vmatprep.mubr.f32.mxu0 0.0
      %755 = vmatmul.mubr.f32.gmra.mxu0 %v329
      %v756 = vpop.f32.mrf.mxu0
      %v757 = vadd.f32 %v620, %v756
      %v758 = vpop.f32.mrf.mxu0
      %759 = vmatprep.mubr.f32.mxu0 0.0
      %760 = vmatmul.mubr.f32.gmra.mxu0 %v332
      %v761 = vpop.f32.mrf.mxu0
      %v762 = vadd.f32 %v620, %v761
      %v763 = vpop.f32.mrf.mxu0
      %764 = vmatprep.mubr.f32.mxu0 0.0
      %765 = vmatmul.mubr.f32.gmra.mxu0 %v335
      %v766 = vpop.f32.mrf.mxu0
      %v767 = vadd.f32 %v620, %v766
      %v768 = vpop.f32.mrf.mxu0
      %769 = vmatprep.mubr.f32.mxu0 0.0
      %770 = vmatmul.mubr.f32.gmra.mxu0 %v338
      %v771 = vpop.f32.mrf.mxu0
      %v772 = vadd.f32 %v620, %v771
      %v773 = vpop.f32.mrf.mxu0
      %774 = vmatprep.mubr.f32.mxu0 0.0
      %775 = vmatmul.mubr.f32.gmra.mxu0 %v341
      %v776 = vpop.f32.mrf.mxu0
      %v777 = vadd.f32 %v620, %v776
      %v778 = vpop.f32.mrf.mxu0
      %779 = vmatprep.mubr.f32.mxu0 0.0
      %780 = vmatmul.mubr.f32.gmra.mxu0 %v344
      %v781 = vpop.f32.mrf.mxu0
      %v782 = vadd.f32 %v620, %v781
      %v783 = vpop.f32.mrf.mxu0
      %784 = vmatprep.mubr.f32.mxu0 0.0
      %785 = vmatmul.mubr.f32.gmra.mxu0 %v347
      %v786 = vpop.f32.mrf.mxu0
      %v787 = vadd.f32 %v620, %v786
      %v788 = vpop.f32.mrf.mxu0
      %789 = vmatprep.mubr.f32.mxu0 0.0
      %790 = vmatmul.mubr.f32.gmra.mxu0 %v350
      %v791 = vpop.f32.mrf.mxu0
      %v792 = vadd.f32 %v620, %v791
      %v793 = vpop.f32.mrf.mxu0
      %794 = vmatprep.mubr.f32.mxu0 0.0
      %795 = vmatmul.mubr.f32.gmra.mxu0 %v353
      %v796 = vpop.f32.mrf.mxu0
      %v797 = vadd.f32 %v620, %v796
      %v798 = vpop.f32.mrf.mxu0
      %799 = vmatprep.mubr.f32.mxu0 0.0
      %800 = vmatmul.mubr.f32.gmra.mxu0 %v356
      %v801 = vpop.f32.mrf.mxu0
      %v802 = vadd.f32 %v620, %v801
      %v803 = vpop.f32.mrf.mxu0
      %804 = vmatprep.mubr.f32.mxu0 0.0
      %805 = vmatmul.mubr.f32.gmra.mxu0 %v359
      %v806 = vpop.f32.mrf.mxu0
      %v807 = vadd.f32 %v620, %v806
      %v808 = vpop.f32.mrf.mxu0
      %809 = vmatprep.mubr.f32.mxu0 0.0
      %810 = vmatmul.mubr.f32.gmra.mxu0 %v362
      %v811 = vpop.f32.mrf.mxu0
      %v812 = vadd.f32 %v620, %v811
      %v813 = vpop.f32.mrf.mxu0
      %814 = vmatprep.mubr.f32.mxu0 0.0
      %815 = vmatmul.mubr.f32.gmra.mxu0 %v365
      %v816 = vpop.f32.mrf.mxu0
      %v817 = vadd.f32 %v620, %v816
      %v818 = vpop.f32.mrf.mxu0
      %819 = vmatprep.mubr.f32.mxu0 0.0
      %820 = vmatmul.mubr.f32.gmra.mxu0 %v368
      %v821 = vpop.f32.mrf.mxu0
      %v822 = vadd.f32 %v620, %v821
      %v823 = vpop.f32.mrf.mxu0
      %824 = vmatprep.mubr.f32.mxu0 0.0
      %825 = vmatmul.mubr.f32.gmra.mxu0 %v371
      %v826 = vpop.f32.mrf.mxu0
      %v827 = vadd.f32 %v620, %v826
      %v828 = vpop.f32.mrf.mxu0
      %829 = vmatprep.mubr.f32.mxu0 0.0
      %830 = vmatmul.mubr.f32.gmra.mxu0 %v374
      %v831 = vpop.f32.mrf.mxu0
      %v832 = vadd.f32 %v620, %v831
      %v833 = vpop.f32.mrf.mxu0
      %834 = vmatprep.mubr.f32.mxu0 0.0
      %835 = vmatmul.mubr.f32.gmra.mxu0 %v377
      %v836 = vpop.f32.mrf.mxu0
      %v837 = vadd.f32 %v620, %v836
      %v838 = vpop.f32.mrf.mxu0
      %839 = vmatprep.mubr.f32.mxu0 0.0
      %840 = vmatmul.mubr.f32.gmra.mxu0 %v380
      %v841 = vpop.f32.mrf.mxu0
      %v842 = vadd.f32 %v620, %v841
      %v843 = vpop.f32.mrf.mxu0
      %844 = vmatprep.mubr.f32.mxu0 0.0
      %845 = vmatmul.mubr.f32.gmra.mxu0 %v383
      %v846 = vpop.f32.mrf.mxu0
      %v847 = vadd.f32 %v620, %v846
      %v848 = vpop.f32.mrf.mxu0
      %849 = vdwg.mxu0
      %v850 = vmax.f32 %v692, 0.0
      %v851 = vmax.f32 %v697, 0.0
      %v852 = vmax.f32 %v702, 0.0
      %v853 = vmax.f32 %v707, 0.0
      %v854 = vmax.f32 %v712, 0.0
      %v855 = vmax.f32 %v717, 0.0
      %v856 = vmax.f32 %v722, 0.0
      %v857 = vmax.f32 %v727, 0.0
      %v858 = vmax.f32 %v732, 0.0
      %v859 = vmax.f32 %v737, 0.0
      %v860 = vmax.f32 %v742, 0.0
      %v861 = vmax.f32 %v747, 0.0
      %v862 = vmax.f32 %v752, 0.0
      %v863 = vmax.f32 %v757, 0.0
      %v864 = vmax.f32 %v762, 0.0
      %v865 = vmax.f32 %v767, 0.0
      %v866 = vmax.f32 %v772, 0.0
      %v867 = vmax.f32 %v777, 0.0
      %v868 = vmax.f32 %v782, 0.0
      %v869 = vmax.f32 %v787, 0.0
      %v870 = vmax.f32 %v792, 0.0
      %v871 = vmax.f32 %v797, 0.0
      %v872 = vmax.f32 %v802, 0.0
      %v873 = vmax.f32 %v807, 0.0
      %v874 = vmax.f32 %v812, 0.0
      %v875 = vmax.f32 %v817, 0.0
      %v876 = vmax.f32 %v822, 0.0
      %v877 = vmax.f32 %v827, 0.0
      %v878 = vmax.f32 %v832, 0.0
      %v879 = vmax.f32 %v837, 0.0
      %v880 = vmax.f32 %v842, 0.0
      %v881 = vmax.f32 %v847, 0.0
      %v882 = vld [vmem:[%s3] sm:$0xff]
      %v883 = vld [vmem:[%s3 + $0x8] sm:$0xff]
      %v884 = vld [vmem:[%s3 + $0x10] sm:$0xff]
      %v885 = vld [vmem:[%s3 + $0x18] sm:$0xff]
      %v886 = vld [vmem:[%s3 + $0x20] sm:$0xff]
      %v887 = vld [vmem:[%s3 + $0x28] sm:$0xff]
      %v888 = vld [vmem:[%s3 + $0x30] sm:$0xff]
      %v889 = vld [vmem:[%s3 + $0x38] sm:$0xff]
      %v890 = vld [vmem:[%s3 + $0x40] sm:$0xff]
      %v891 = vld [vmem:[%s3 + $0x48] sm:$0xff]
      %v892 = vld [vmem:[%s3 + $0x50] sm:$0xff]
      %v893 = vld [vmem:[%s3 + $0x58] sm:$0xff]
      %v894 = vld [vmem:[%s3 + $0x60] sm:$0xff]
      %v895 = vld [vmem:[%s3 + $0x68] sm:$0xff]
      %v896 = vld [vmem:[%s3 + $0x70] sm:$0xff]
      %v897 = vld [vmem:[%s3 + $0x78] sm:$0xff]
      %v898 = vld [vmem:[%s4] sm:$0x1]
      %v900 = vlaneseq
      %v901 = vshrl.u32 %v900, 7
      %v902 = vsub.s32 0, %v901
      %v903 = vrot.slane %v898, %v902
      %905 = vmatprep.subr.mxu0 0.0
      %906 = vmatpush1.msra.mxu0 %v897
      %907 = vmatprep.subr.mxu0 0.0
      %908 = vmatpush1.msra.mxu0 %v896
      %909 = vmatprep.subr.mxu0 0.0
      %910 = vmatpush1.msra.mxu0 %v895
      %911 = vmatprep.subr.mxu0 0.0
      %912 = vmatpush1.msra.mxu0 %v894
      %913 = vmatprep.subr.mxu0 0.0
      %914 = vmatpush1.msra.mxu0 %v893
      %915 = vmatprep.subr.mxu0 0.0
      %916 = vmatpush1.msra.mxu0 %v892
      %917 = vmatprep.subr.mxu0 0.0
      %918 = vmatpush1.msra.mxu0 %v891
      %919 = vmatprep.subr.mxu0 0.0
      %920 = vmatpush1.msra.mxu0 %v890
      %921 = vmatprep.subr.mxu0 0.0
      %922 = vmatpush1.msra.mxu0 %v889
      %923 = vmatprep.subr.mxu0 0.0
      %924 = vmatpush1.msra.mxu0 %v888
      %925 = vmatprep.subr.mxu0 0.0
      %926 = vmatpush1.msra.mxu0 %v887
      %927 = vmatprep.subr.mxu0 0.0
      %928 = vmatpush1.msra.mxu0 %v886
      %929 = vmatprep.subr.mxu0 0.0
      %930 = vmatpush1.msra.mxu0 %v885
      %931 = vmatprep.subr.mxu0 0.0
      %932 = vmatpush1.msra.mxu0 %v884
      %933 = vmatprep.subr.mxu0 0.0
      %934 = vmatpush1.msra.mxu0 %v883
      %935 = vmatprep.subr.mxu0 0.0
      %936 = vmatpush1.msra.mxu0 %v882
      %937 = vmatprep.subr.mxu0 0.0
      %938 = vmatpush2.msra.mxu0 0.0
      %939 = vmatprep.subr.mxu0 0.0
      %940 = vmatpush2.msra.mxu0 0.0
      %941 = vmatprep.subr.mxu0 0.0
      %942 = vmatpush2.msra.mxu0 0.0
      %943 = vmatprep.subr.mxu0 0.0
      %944 = vmatpush2.msra.mxu0 0.0
      %945 = vmatprep.subr.mxu0 0.0
      %946 = vmatpush2.msra.mxu0 0.0
      %947 = vmatprep.subr.mxu0 0.0
      %948 = vmatpush2.msra.mxu0 0.0
      %949 = vmatprep.subr.mxu0 0.0
      %950 = vmatpush2.msra.mxu0 0.0
      %951 = vmatprep.subr.mxu0 0.0
      %952 = vmatpush2.msra.mxu0 0.0
      %953 = vmatprep.subr.mxu0 0.0
      %954 = vmatpush2.msra.mxu0 0.0
      %955 = vmatprep.subr.mxu0 0.0
      %956 = vmatpush2.msra.mxu0 0.0
      %957 = vmatprep.subr.mxu0 0.0
      %958 = vmatpush2.msra.mxu0 0.0
      %959 = vmatprep.subr.mxu0 0.0
      %960 = vmatpush2.msra.mxu0 0.0
      %961 = vmatprep.subr.mxu0 0.0
      %962 = vmatpush2.msra.mxu0 0.0
      %963 = vmatprep.subr.mxu0 0.0
      %964 = vmatpush2.msra.mxu0 0.0
      %965 = vmatprep.subr.mxu0 0.0
      %966 = vmatpush2.msra.mxu0 0.0
      %967 = vmatprep.subr.mxu0 0.0
      %968 = vmatpush2.msra.mxu0 0.0
      %969 = vmatprep.mubr.f32.mxu0 0.0
      %970 = vmatmul.mubr.f32.gmra.mxu0 %v850
      %v971 = vpop.f32.mrf.mxu0
      %v972 = vadd.f32 %v903, %v971
      %v973 = vpop.f32.mrf.mxu0
      %974 = vmatprep.mubr.f32.mxu0 0.0
      %975 = vmatmul.mubr.f32.gmra.mxu0 %v851
      %v976 = vpop.f32.mrf.mxu0
      %v977 = vadd.f32 %v903, %v976
      %v978 = vpop.f32.mrf.mxu0
      %979 = vmatprep.mubr.f32.mxu0 0.0
      %980 = vmatmul.mubr.f32.gmra.mxu0 %v852
      %v981 = vpop.f32.mrf.mxu0
      %v982 = vadd.f32 %v903, %v981
      %v983 = vpop.f32.mrf.mxu0
      %984 = vmatprep.mubr.f32.mxu0 0.0
      %985 = vmatmul.mubr.f32.gmra.mxu0 %v853
      %v986 = vpop.f32.mrf.mxu0
      %v987 = vadd.f32 %v903, %v986
      %v988 = vpop.f32.mrf.mxu0
      %989 = vmatprep.mubr.f32.mxu0 0.0
      %990 = vmatmul.mubr.f32.gmra.mxu0 %v854
      %v991 = vpop.f32.mrf.mxu0
      %v992 = vadd.f32 %v903, %v991
      %v993 = vpop.f32.mrf.mxu0
      %994 = vmatprep.mubr.f32.mxu0 0.0
      %995 = vmatmul.mubr.f32.gmra.mxu0 %v855
      %v996 = vpop.f32.mrf.mxu0
      %v997 = vadd.f32 %v903, %v996
      %v998 = vpop.f32.mrf.mxu0
      %999 = vmatprep.mubr.f32.mxu0 0.0
      %1000 = vmatmul.mubr.f32.gmra.mxu0 %v856
      %v1001 = vpop.f32.mrf.mxu0
      %v1002 = vadd.f32 %v903, %v1001
      %v1003 = vpop.f32.mrf.mxu0
      %1004 = vmatprep.mubr.f32.mxu0 0.0
      %1005 = vmatmul.mubr.f32.gmra.mxu0 %v857
      %v1006 = vpop.f32.mrf.mxu0
      %v1007 = vadd.f32 %v903, %v1006
      %v1008 = vpop.f32.mrf.mxu0
      %1009 = vmatprep.mubr.f32.mxu0 0.0
      %1010 = vmatmul.mubr.f32.gmra.mxu0 %v858
      %v1011 = vpop.f32.mrf.mxu0
      %v1012 = vadd.f32 %v903, %v1011
      %v1013 = vpop.f32.mrf.mxu0
      %1014 = vmatprep.mubr.f32.mxu0 0.0
      %1015 = vmatmul.mubr.f32.gmra.mxu0 %v859
      %v1016 = vpop.f32.mrf.mxu0
      %v1017 = vadd.f32 %v903, %v1016
      %v1018 = vpop.f32.mrf.mxu0
      %1019 = vmatprep.mubr.f32.mxu0 0.0
      %1020 = vmatmul.mubr.f32.gmra.mxu0 %v860
      %v1021 = vpop.f32.mrf.mxu0
      %v1022 = vadd.f32 %v903, %v1021
      %v1023 = vpop.f32.mrf.mxu0
      %1024 = vmatprep.mubr.f32.mxu0 0.0
      %1025 = vmatmul.mubr.f32.gmra.mxu0 %v861
      %v1026 = vpop.f32.mrf.mxu0
      %v1027 = vadd.f32 %v903, %v1026
      %v1028 = vpop.f32.mrf.mxu0
      %1029 = vmatprep.mubr.f32.mxu0 0.0
      %1030 = vmatmul.mubr.f32.gmra.mxu0 %v862
      %v1031 = vpop.f32.mrf.mxu0
      %v1032 = vadd.f32 %v903, %v1031
      %v1033 = vpop.f32.mrf.mxu0
      %1034 = vmatprep.mubr.f32.mxu0 0.0
      %1035 = vmatmul.mubr.f32.gmra.mxu0 %v863
      %v1036 = vpop.f32.mrf.mxu0
      %v1037 = vadd.f32 %v903, %v1036
      %v1038 = vpop.f32.mrf.mxu0
      %1039 = vmatprep.mubr.f32.mxu0 0.0
      %1040 = vmatmul.mubr.f32.gmra.mxu0 %v864
      %v1041 = vpop.f32.mrf.mxu0
      %v1042 = vadd.f32 %v903, %v1041
      %v1043 = vpop.f32.mrf.mxu0
      %1044 = vmatprep.mubr.f32.mxu0 0.0
      %1045 = vmatmul.mubr.f32.gmra.mxu0 %v865
      %v1046 = vpop.f32.mrf.mxu0
      %v1047 = vadd.f32 %v903, %v1046
      %v1048 = vpop.f32.mrf.mxu0
      %1049 = vmatprep.mubr.f32.mxu0 0.0
      %1050 = vmatmul.mubr.f32.gmra.mxu0 %v866
      %v1051 = vpop.f32.mrf.mxu0
      %v1052 = vadd.f32 %v903, %v1051
      %v1053 = vpop.f32.mrf.mxu0
      %1054 = vmatprep.mubr.f32.mxu0 0.0
      %1055 = vmatmul.mubr.f32.gmra.mxu0 %v867
      %v1056 = vpop.f32.mrf.mxu0
      %v1057 = vadd.f32 %v903, %v1056
      %v1058 = vpop.f32.mrf.mxu0
      %1059 = vmatprep.mubr.f32.mxu0 0.0
      %1060 = vmatmul.mubr.f32.gmra.mxu0 %v868
      %v1061 = vpop.f32.mrf.mxu0
      %v1062 = vadd.f32 %v903, %v1061
      %v1063 = vpop.f32.mrf.mxu0
      %1064 = vmatprep.mubr.f32.mxu0 0.0
      %1065 = vmatmul.mubr.f32.gmra.mxu0 %v869
      %v1066 = vpop.f32.mrf.mxu0
      %v1067 = vadd.f32 %v903, %v1066
      %v1068 = vpop.f32.mrf.mxu0
      %1069 = vmatprep.mubr.f32.mxu0 0.0
      %1070 = vmatmul.mubr.f32.gmra.mxu0 %v870
      %v1071 = vpop.f32.mrf.mxu0
      %v1072 = vadd.f32 %v903, %v1071
      %v1073 = vpop.f32.mrf.mxu0
      %1074 = vmatprep.mubr.f32.mxu0 0.0
      %1075 = vmatmul.mubr.f32.gmra.mxu0 %v871
      %v1076 = vpop.f32.mrf.mxu0
      %v1077 = vadd.f32 %v903, %v1076
      %v1078 = vpop.f32.mrf.mxu0
      %1079 = vmatprep.mubr.f32.mxu0 0.0
      %1080 = vmatmul.mubr.f32.gmra.mxu0 %v872
      %v1081 = vpop.f32.mrf.mxu0
      %v1082 = vadd.f32 %v903, %v1081
      %v1083 = vpop.f32.mrf.mxu0
      %1084 = vmatprep.mubr.f32.mxu0 0.0
      %1085 = vmatmul.mubr.f32.gmra.mxu0 %v873
      %v1086 = vpop.f32.mrf.mxu0
      %v1087 = vadd.f32 %v903, %v1086
      %v1088 = vpop.f32.mrf.mxu0
      %1089 = vmatprep.mubr.f32.mxu0 0.0
      %1090 = vmatmul.mubr.f32.gmra.mxu0 %v874
      %v1091 = vpop.f32.mrf.mxu0
      %v1092 = vadd.f32 %v903, %v1091
      %v1093 = vpop.f32.mrf.mxu0
      %1094 = vmatprep.mubr.f32.mxu0 0.0
      %1095 = vmatmul.mubr.f32.gmra.mxu0 %v875
      %v1096 = vpop.f32.mrf.mxu0
      %v1097 = vadd.f32 %v903, %v1096
      %v1098 = vpop.f32.mrf.mxu0
      %1099 = vmatprep.mubr.f32.mxu0 0.0
      %1100 = vmatmul.mubr.f32.gmra.mxu0 %v876
      %v1101 = vpop.f32.mrf.mxu0
      %v1102 = vadd.f32 %v903, %v1101
      %v1103 = vpop.f32.mrf.mxu0
      %1104 = vmatprep.mubr.f32.mxu0 0.0
      %1105 = vmatmul.mubr.f32.gmra.mxu0 %v877
      %v1106 = vpop.f32.mrf.mxu0
      %v1107 = vadd.f32 %v903, %v1106
      %v1108 = vpop.f32.mrf.mxu0
      %1109 = vmatprep.mubr.f32.mxu0 0.0
      %1110 = vmatmul.mubr.f32.gmra.mxu0 %v878
      %v1111 = vpop.f32.mrf.mxu0
      %v1112 = vadd.f32 %v903, %v1111
      %v1113 = vpop.f32.mrf.mxu0
      %1114 = vmatprep.mubr.f32.mxu0 0.0
      %1115 = vmatmul.mubr.f32.gmra.mxu0 %v879
      %v1116 = vpop.f32.mrf.mxu0
      %v1117 = vadd.f32 %v903, %v1116
      %v1118 = vpop.f32.mrf.mxu0
      %1119 = vmatprep.mubr.f32.mxu0 0.0
      %1120 = vmatmul.mubr.f32.gmra.mxu0 %v880
      %v1121 = vpop.f32.mrf.mxu0
      %v1122 = vadd.f32 %v903, %v1121
      %v1123 = vpop.f32.mrf.mxu0
      %1124 = vmatprep.mubr.f32.mxu0 0.0
      %1125 = vmatmul.mubr.f32.gmra.mxu0 %v881
      %v1126 = vpop.f32.mrf.mxu0
      %v1127 = vadd.f32 %v903, %v1126
      %v1128 = vpop.f32.mrf.mxu0
      %1129 = vdwg.mxu0
      %v1130 = vmax.f32 %v972, 0.0
      %v1131 = vmax.f32 %v977, 0.0
      %v1132 = vmax.f32 %v982, 0.0
      %v1133 = vmax.f32 %v987, 0.0
      %v1134 = vmax.f32 %v992, 0.0
      %v1135 = vmax.f32 %v997, 0.0
      %v1136 = vmax.f32 %v1002, 0.0
      %v1137 = vmax.f32 %v1007, 0.0
      %v1138 = vmax.f32 %v1012, 0.0
      %v1139 = vmax.f32 %v1017, 0.0
      %v1140 = vmax.f32 %v1022, 0.0
      %v1141 = vmax.f32 %v1027, 0.0
      %v1142 = vmax.f32 %v1032, 0.0
      %v1143 = vmax.f32 %v1037, 0.0
      %v1144 = vmax.f32 %v1042, 0.0
      %v1145 = vmax.f32 %v1047, 0.0
      %v1146 = vmax.f32 %v1052, 0.0
      %v1147 = vmax.f32 %v1057, 0.0
      %v1148 = vmax.f32 %v1062, 0.0
      %v1149 = vmax.f32 %v1067, 0.0
      %v1150 = vmax.f32 %v1072, 0.0
      %v1151 = vmax.f32 %v1077, 0.0
      %v1152 = vmax.f32 %v1082, 0.0
      %v1153 = vmax.f32 %v1087, 0.0
      %v1154 = vmax.f32 %v1092, 0.0
      %v1155 = vmax.f32 %v1097, 0.0
      %v1156 = vmax.f32 %v1102, 0.0
      %v1157 = vmax.f32 %v1107, 0.0
      %v1158 = vmax.f32 %v1112, 0.0
      %v1159 = vmax.f32 %v1117, 0.0
      %v1160 = vmax.f32 %v1122, 0.0
      %v1161 = vmax.f32 %v1127, 0.0
      %v1162 = vadd.f32 %v1130, %v456
      %v1163 = vadd.f32 %v1131, %v461
      %v1164 = vadd.f32 %v1132, %v466
      %v1165 = vadd.f32 %v1133, %v471
      %v1166 = vadd.f32 %v1134, %v476
      %v1167 = vadd.f32 %v1135, %v481
      %v1168 = vadd.f32 %v1136, %v486
      %v1169 = vadd.f32 %v1137, %v491
      %v1170 = vadd.f32 %v1138, %v496
      %v1171 = vadd.f32 %v1139, %v501
      %v1172 = vadd.f32 %v1140, %v506
      %v1173 = vadd.f32 %v1141, %v511
      %v1174 = vadd.f32 %v1142, %v516
      %v1175 = vadd.f32 %v1143, %v521
      %v1176 = vadd.f32 %v1144, %v526
      %v1177 = vadd.f32 %v1145, %v531
      %v1178 = vadd.f32 %v1146, %v536
      %v1179 = vadd.f32 %v1147, %v541
      %v1180 = vadd.f32 %v1148, %v546
      %v1181 = vadd.f32 %v1149, %v551
      %v1182 = vadd.f32 %v1150, %v556
      %v1183 = vadd.f32 %v1151, %v561
      %v1184 = vadd.f32 %v1152, %v566
      %v1185 = vadd.f32 %v1153, %v571
      %v1186 = vadd.f32 %v1154, %v576
      %v1187 = vadd.f32 %v1155, %v581
      %v1188 = vadd.f32 %v1156, %v586
      %v1189 = vadd.f32 %v1157, %v591
      %v1190 = vadd.f32 %v1158, %v596
      %v1191 = vadd.f32 %v1159, %v601
      %v1192 = vadd.f32 %v1160, %v606
      %v1193 = vadd.f32 %v1161, %v611
      %v1194 = vmax.f32 %v1162, 0.0
      %v1195 = vmax.f32 %v1163, 0.0
      %v1196 = vmax.f32 %v1164, 0.0
      %v1197 = vmax.f32 %v1165, 0.0
      %v1198 = vmax.f32 %v1166, 0.0
      %v1199 = vmax.f32 %v1167, 0.0
      %v1200 = vmax.f32 %v1168, 0.0
      %v1201 = vmax.f32 %v1169, 0.0
      %v1202 = vmax.f32 %v1170, 0.0
      %v1203 = vmax.f32 %v1171, 0.0
      %v1204 = vmax.f32 %v1172, 0.0
      %v1205 = vmax.f32 %v1173, 0.0
      %v1206 = vmax.f32 %v1174, 0.0
      %v1207 = vmax.f32 %v1175, 0.0
      %v1208 = vmax.f32 %v1176, 0.0
      %v1209 = vmax.f32 %v1177, 0.0
      %v1210 = vmax.f32 %v1178, 0.0
      %v1211 = vmax.f32 %v1179, 0.0
      %v1212 = vmax.f32 %v1180, 0.0
      %v1213 = vmax.f32 %v1181, 0.0
      %v1214 = vmax.f32 %v1182, 0.0
      %v1215 = vmax.f32 %v1183, 0.0
      %v1216 = vmax.f32 %v1184, 0.0
      %v1217 = vmax.f32 %v1185, 0.0
      %v1218 = vmax.f32 %v1186, 0.0
      %v1219 = vmax.f32 %v1187, 0.0
      %v1220 = vmax.f32 %v1188, 0.0
      %v1221 = vmax.f32 %v1189, 0.0
      %v1222 = vmax.f32 %v1190, 0.0
      %v1223 = vmax.f32 %v1191, 0.0
      %v1224 = vmax.f32 %v1192, 0.0
      %v1225 = vmax.f32 %v1193, 0.0
      %1226 = vst.msk [vmem:[%s253] sm:$0xff] %vm288, %v1194
      %1227 = vst.msk [vmem:[%s253 + $0x8] sm:$0xff] %vm288, %v1195
      %1228 = vst.msk [vmem:[%s253 + $0x10] sm:$0xff] %vm288, %v1196
      %1229 = vst.msk [vmem:[%s253 + $0x18] sm:$0xff] %vm288, %v1197
      %1230 = vst.msk [vmem:[%s253 + $0x20] sm:$0xff] %vm288, %v1198
      %1231 = vst.msk [vmem:[%s253 + $0x28] sm:$0xff] %vm288, %v1199
      %1232 = vst.msk [vmem:[%s253 + $0x30] sm:$0xff] %vm288, %v1200
      %1233 = vst.msk [vmem:[%s253 + $0x38] sm:$0xff] %vm288, %v1201
      %1234 = vst.msk [vmem:[%s253 + $0x40] sm:$0xff] %vm288, %v1202
      %1235 = vst.msk [vmem:[%s253 + $0x48] sm:$0xff] %vm288, %v1203
      %1236 = vst.msk [vmem:[%s253 + $0x50] sm:$0xff] %vm288, %v1204
      %1237 = vst.msk [vmem:[%s253 + $0x58] sm:$0xff] %vm288, %v1205
      %1238 = vst.msk [vmem:[%s253 + $0x60] sm:$0xff] %vm288, %v1206
      %1239 = vst.msk [vmem:[%s253 + $0x68] sm:$0xff] %vm288, %v1207
      %1240 = vst.msk [vmem:[%s253 + $0x70] sm:$0xff] %vm288, %v1208
      %1241 = vst.msk [vmem:[%s253 + $0x78] sm:$0xff] %vm288, %v1209
      %1242 = vst.msk [vmem:[%s253 + $0x80] sm:$0xff] %vm288, %v1210
      %1243 = vst.msk [vmem:[%s253 + $0x88] sm:$0xff] %vm288, %v1211
      %1244 = vst.msk [vmem:[%s253 + $0x90] sm:$0xff] %vm288, %v1212
      %1245 = vst.msk [vmem:[%s253 + $0x98] sm:$0xff] %vm288, %v1213
      %1246 = vst.msk [vmem:[%s253 + $0xa0] sm:$0xff] %vm288, %v1214
      %1247 = vst.msk [vmem:[%s253 + $0xa8] sm:$0xff] %vm288, %v1215
      %1248 = vst.msk [vmem:[%s253 + $0xb0] sm:$0xff] %vm288, %v1216
      %1249 = vst.msk [vmem:[%s253 + $0xb8] sm:$0xff] %vm288, %v1217
      %1250 = vst.msk [vmem:[%s253 + $0xc0] sm:$0xff] %vm288, %v1218
      %1251 = vst.msk [vmem:[%s253 + $0xc8] sm:$0xff] %vm288, %v1219
      %1252 = vst.msk [vmem:[%s253 + $0xd0] sm:$0xff] %vm288, %v1220
      %1253 = vst.msk [vmem:[%s253 + $0xd8] sm:$0xff] %vm288, %v1221
      %1254 = vst.msk [vmem:[%s253 + $0xe0] sm:$0xff] %vm288, %v1222
      %1255 = vst.msk [vmem:[%s253 + $0xe8] sm:$0xff] %vm288, %v1223
      %1256 = vst.msk [vmem:[%s253 + $0xf0] sm:$0xff] %vm288, %v1224
      %1257 = vst.msk [vmem:[%s253 + $0xf8] sm:$0xff] %vm288, %v1225
      %s1258 = smul.u32 32, %s17
      %p1259 = scmp.lt.s32.totalorder %s1258, 63
      %s1260 = scalar_select %p1259, %s1258, 63
      %s1261 = smul.addr %s1260, 8
      %s1262 = scalar_lea.vmem %s6, %s1261
      // Predicated region
      $region45: #{_lambda_.1} parent=43 // pred_check
        %p1263 = pneg %p166
      $region46: #{_lambda_.1} parent=43 // pred_check_branch
        %1265 = sbr.rel (%p1263) target = $region48
      $region47: #{_lambda_.1} parent=43 // pred_region
        %s1266 = smul.u32 32, %s17
      $region48: #{_lambda_.1} parent=43 // pred_fallthru
        _
    $region44: #{_lambda_.1} parent=5 // pred_fallthru
      _
    %p1267 = scmp.le.s32.totalorder 2, %s12
    // Predicated region
    $region49: #{_lambda_.1} parent=5 // pred_check
      %p1268 = pneg %p1267
    $region50: #{_lambda_.1} parent=5 // pred_check_branch
      %1270 = sbr.rel (%p1268) target = $region52
    $region51: #{_lambda_.1} parent=5 // pred_region
      %s1271 = ssub.s32 %s12, 2
      // Predicated region
      $region53: #{_lambda_.1} parent=51 // pred_check
        %p1272 = pneg %p172
      $region54: #{_lambda_.1} parent=51 // pred_check_branch
        %1274 = sbr.rel (%p1272) target = $region56
      $region55: #{_lambda_.1} parent=51 // pred_region
        %s1275 = smul.u32 32, %s18
        %p1276 = scmp.lt.s32.totalorder %s1275, 63
        %s1277 = scalar_select %p1276, %s1275, 63
        %s1278 = smul.addr %s1277, 8
        %s1279 = scalar_lea.vmem %s6, %s1278
      $region56: #{_lambda_.1} parent=51 // pred_fallthru
        _
    $region52: #{_lambda_.1} parent=5 // pred_fallthru
      _
  $region6: #{_lambda_.1} parent=0 // loop_footer
    %s16 = sadd.s32 1, %s12
  $region7: #{_lambda_.1} parent=0 // loop_footer_branch
    %11 = sbr.rel target = $region3
  $region8: #{_lambda_.1} parent=0 // loop_exit
    _

</llo_original>
